<compile_context>
chip_gen: v7x
topology: tpu7x:2x2x1
jax: 0.10.0
libtpu: 0.0.40
codegen_flags: <defaults>
</compile_context>

<pallas_src>
import jax
import jax.numpy as jnp
from jax.experimental import pallas as pl
from jax.experimental.pallas import tpu as pltpu


def _famlstm_kernel(x_ref, wih_ref, whh_ref, bias_ref, whead_ref, bhead_ref,
                    o_ref):
    # x_ref:     (T*M, Din)  time-major flattened inputs, M = num_repeat * batch
    # wih_ref:   (Din, 4H)   input->gates weights (pre-transposed, gate order i,f,g,o)
    # whh_ref:   (H, 4H)     hidden->gates weights (pre-transposed)
    # bias_ref:  (1, 4H)     fused gate bias (b_ih + b_hh)
    # whead_ref: (N, H, O)   per-repeat head weights (pre-transposed)
    # bhead_ref: (N, 1, O)   per-repeat head biases
    # o_ref:     (M, O)      flattened predictions (repeat-major rows)
    TM, Din = x_ref.shape
    H, H4 = whh_ref.shape
    N, _, O = whead_ref.shape
    M, _ = o_ref.shape
    T = TM // M
    B = M // N

    # ---- Fused input projection for ALL timesteps / sequences in one MXU pass.
    xproj = jnp.dot(x_ref[...].astype(jnp.float32), wih_ref[...],
                    preferred_element_type=jnp.float32) + bias_ref[...]

    # Pre-extract per-timestep slabs as values (static slices; no scratch,
    # no per-step VMEM reload, extraction has no recurrence dependence so the
    # scheduler can hide it).
    xslabs = [xproj[t * M:(t + 1) * M, :] for t in range(T)]

    # Hoist the loop-invariant recurrent weight load out of the unrolled loop.
    whh = whh_ref[...]

    # Recurrence state lives in vregs.
    h = jnp.zeros((M, H), jnp.float32)
    c = jnp.zeros((M, H), jnp.float32)

    # Statically unrolled recurrence over T (T is small and compile-time).
    for t in range(T):
        gates = xslabs[t] + jnp.dot(h, whh, preferred_element_type=jnp.float32)
        # sigmoid(x) == 0.5 * tanh(0.5 * x) + 0.5 : one EUP push for i/f/o.
        sig = 0.5 * jnp.tanh(0.5 * gates) + 0.5
        tnh = jnp.tanh(gates)
        i_g = sig[:, 0:H]
        f_g = sig[:, H:2 * H]
        g_g = tnh[:, 2 * H:3 * H]
        o_g = sig[:, 3 * H:4 * H]
        c = f_g * c + i_g * g_g
        h = o_g * jnp.tanh(c)

    # ---- Per-repeat head projection on the final hidden state:
    # N small static-sliced matmuls, assembled into one 2D store.
    outs = []
    for n in range(N):
        h_n = h[n * B:(n + 1) * B, :]
        outs.append(jnp.dot(h_n, whead_ref[n],
                            preferred_element_type=jnp.float32) + bhead_ref[n])
    o_ref[...] = jnp.concatenate(outs, axis=0).astype(o_ref.dtype)


def famlstm_forward(inputs_list, wih, whh, bih, bhh, whead, bhead):
    """FAMLSTM.forward.

    inputs_list: list of N arrays, each (B, T, 15)
    wih: (4H, 15), whh: (4H, H), bih/bhh: (4H,)  -- PyTorch lstm1 params
    whead: (N, O, H), bhead: (N, O)              -- stacked head_layers params
    Returns: list of N arrays, each (B, O)  (== pred in the PyTorch forward).
    """
    x = jnp.stack(inputs_list)            # (N, B, T, Din)
    N, B, T, Din = x.shape
    H4 = wih.shape[0]
    H = H4 // 4
    O = whead.shape[1]
    M = N * B

    # Time-major and flattened to 2D in the wrapper: the kernel's fused input
    # projection is a single dense (T*M, Din) @ (Din, 4H) matmul and each
    # timestep slab is a contiguous row block (no in-kernel repack).
    x_tm = jnp.transpose(x, (2, 0, 1, 3)).reshape(T * M, Din).astype(jnp.float32)
    wih_t = wih.T                          # (Din, 4H)
    whh_t = whh.T                          # (H, 4H)
    bias = (bih + bhh).reshape(1, H4)      # fused gate bias
    whead_t = jnp.transpose(whead, (0, 2, 1))   # (N, H, O)
    bhead_r = bhead.reshape(N, 1, O)

    out = pl.pallas_call(
        _famlstm_kernel,
        out_shape=jax.ShapeDtypeStruct((M, O), jnp.float32),
        grid=(1,),
        in_specs=[
            pl.BlockSpec((T * M, Din), lambda i: (0, 0)),     # x (time-major, 2D)
            pl.BlockSpec((Din, H4), lambda i: (0, 0)),        # W_ih^T
            pl.BlockSpec((H, H4), lambda i: (0, 0)),          # W_hh^T
            pl.BlockSpec((1, H4), lambda i: (0, 0)),          # fused bias
            pl.BlockSpec((N, H, O), lambda i: (0, 0, 0)),     # head weights
            pl.BlockSpec((N, 1, O), lambda i: (0, 0, 0)),     # head biases
        ],
        out_specs=pl.BlockSpec((M, O), lambda i: (0, 0)),
        compiler_params=pltpu.CompilerParams(
            dimension_semantics=("arbitrary",),
            # Actual footprint here is well under 1 MiB; explicit small limit
            # keeps headroom on all generations (v5e/v6e/v7x).
            vmem_limit_bytes=8 * 1024 * 1024,
        ),
    )(x_tm, wih_t, whh_t, bias, whead_t, bhead_r)

    out = out.reshape(N, B, O)
    return [out[i] for i in range(N)]


def _reference(inputs_list, wih, whh, bih, bhh, whead, bhead):
    """Pure-JAX reference mirroring PyTorch nn.LSTM + per-repeat Linear head."""
    H = whh.shape[1]
    preds = []
    for n, x in enumerate(inputs_list):
        B, T, _ = x.shape
        h = jnp.zeros((B, H), jnp.float32)
        c = jnp.zeros((B, H), jnp.float32)
        for t in range(T):
            gates = x[:, t, :] @ wih.T + bih + h @ whh.T + bhh
            i_g = jax.nn.sigmoid(gates[:, 0:H])
            f_g = jax.nn.sigmoid(gates[:, H:2 * H])
            g_g = jnp.tanh(gates[:, 2 * H:3 * H])
            o_g = jax.nn.sigmoid(gates[:, 3 * H:4 * H])
            c = f_g * c + i_g * g_g
            h = o_g * jnp.tanh(c)
        preds.append(h @ whead[n].T + bhead[n])
    return preds


if __name__ == "__main__":
    # num_repeat, batch, seq, input dim (fixed at 15 by the module), hidden, out_size
    N, B, T, Din, H, O = 2, 2, 8, 15, 32, 8

    key = jax.random.PRNGKey(0)
    ks = jax.random.split(key, 7)
    bound = 1.0 / jnp.sqrt(jnp.float32(H))  # PyTorch LSTM/Linear init bound

    inputs_list = [
        jax.random.normal(k, (B, T, Din), jnp.float32)
        for k in jax.random.split(ks[0], N)
    ]
    wih = jax.random.uniform(ks[1], (4 * H, Din), jnp.float32, -bound, bound)
    whh = jax.random.uniform(ks[2], (4 * H, H), jnp.float32, -bound, bound)
    bih = jax.random.uniform(ks[3], (4 * H,), jnp.float32, -bound, bound)
    bhh = jax.random.uniform(ks[4], (4 * H,), jnp.float32, -bound, bound)
    whead = jax.random.uniform(ks[5], (N, O, H), jnp.float32, -bound, bound)
    bhead = jax.random.uniform(ks[6], (N, O), jnp.float32, -bound, bound)
    # TODO(synk): lstm2 / Attention / dropout / dense / fc / relu are defined in
    # FAMLSTM.__init__ but never used by forward(); intentionally not implemented.

    pred = famlstm_forward(inputs_list, wih, whh, bih, bhh, whead, bhead)
    pred = jax.block_until_ready(pred)

    ref = _reference(inputs_list, wih, whh, bih, bhh, whead, bhead)
    assert len(pred) == N
    for p, r in zip(pred, ref):
        assert p.shape == (B, O)
        assert jnp.allclose(p, r, atol=1e-4, rtol=1e-4), float(jnp.max(jnp.abs(p - r)))

    print("KERNEL_OK")
</pallas_src>

<mosaic_0001>
module attributes {stable_mosaic.version = 11 : i64} {
  func.func @_famlstm_kernel(%arg0: i32, %arg1: memref<32x15xf32, #tpu.memory_space<vmem>>, %arg2: memref<15x128xf32, #tpu.memory_space<vmem>>, %arg3: memref<32x128xf32, #tpu.memory_space<vmem>>, %arg4: memref<1x128xf32, #tpu.memory_space<vmem>>, %arg5: memref<2x32x8xf32, #tpu.memory_space<vmem>>, %arg6: memref<2x1x8xf32, #tpu.memory_space<vmem>>, %arg7: memref<4x8xf32, #tpu.memory_space<vmem>>) attributes {dimension_semantics = [#tpu.dimension_semantics<arbitrary>], iteration_bounds = array<i64: 1>, scalar_prefetch = 0 : i64, scratch_operands = 0 : i64, tpu.core_type = #tpu.core_type<tc>, window_params = [{pipeline_mode = #tpu.pipeline_mode<synchronous>, transform_indices = @transform_0, window_bounds = array<i64: 32, 15>}, {pipeline_mode = #tpu.pipeline_mode<synchronous>, transform_indices = @transform_1, window_bounds = array<i64: 15, 128>}, {pipeline_mode = #tpu.pipeline_mode<synchronous>, transform_indices = @transform_2, window_bounds = array<i64: 32, 128>}, {pipeline_mode = #tpu.pipeline_mode<synchronous>, transform_indices = @transform_3, window_bounds = array<i64: 1, 128>}, {pipeline_mode = #tpu.pipeline_mode<synchronous>, transform_indices = @transform_4, window_bounds = array<i64: 2, 32, 8>}, {pipeline_mode = #tpu.pipeline_mode<synchronous>, transform_indices = @transform_5, window_bounds = array<i64: 2, 1, 8>}, {pipeline_mode = #tpu.pipeline_mode<synchronous>, transform_indices = @transform_6, window_bounds = array<i64: 4, 8>}]} {
    %c0 = arith.constant 0 : index
    %c0_0 = arith.constant 0 : index
    %0 = vector.load %arg1[%c0, %c0_0] : memref<32x15xf32, #tpu.memory_space<vmem>>, vector<32x15xf32>
    %c0_1 = arith.constant 0 : index
    %c0_2 = arith.constant 0 : index
    %1 = vector.load %arg2[%c0_1, %c0_2] : memref<15x128xf32, #tpu.memory_space<vmem>>, vector<15x128xf32>
    %cst = arith.constant dense<0.000000e+00> : vector<32x128xf32>
    %2 = tpu.matmul %0, %1, %cst {dimension_numbers = #tpu.dot_dimension_numbers<[1], [0], [0], [1], [0, 0, 1, 1], [], []>} : vector<32x15xf32>, vector<15x128xf32>, vector<32x128xf32> -> vector<32x128xf32>
    %c0_3 = arith.constant 0 : index
    %c0_4 = arith.constant 0 : index
    %3 = vector.load %arg4[%c0_3, %c0_4] : memref<1x128xf32, #tpu.memory_space<vmem>>, vector<1x128xf32>
    %4 = vector.broadcast %3 : vector<1x128xf32> to vector<32x128xf32>
    %5 = arith.addf %2, %4 : vector<32x128xf32>
    %6 = vector.extract_strided_slice %5 {offsets = [0, 0], sizes = [4, 128], strides = [1, 1]} : vector<32x128xf32> to vector<4x128xf32>
    %7 = vector.extract_strided_slice %5 {offsets = [4, 0], sizes = [4, 128], strides = [1, 1]} : vector<32x128xf32> to vector<4x128xf32>
    %8 = vector.extract_strided_slice %5 {offsets = [8, 0], sizes = [4, 128], strides = [1, 1]} : vector<32x128xf32> to vector<4x128xf32>
    %9 = vector.extract_strided_slice %5 {offsets = [12, 0], sizes = [4, 128], strides = [1, 1]} : vector<32x128xf32> to vector<4x128xf32>
    %10 = vector.extract_strided_slice %5 {offsets = [16, 0], sizes = [4, 128], strides = [1, 1]} : vector<32x128xf32> to vector<4x128xf32>
    %11 = vector.extract_strided_slice %5 {offsets = [20, 0], sizes = [4, 128], strides = [1, 1]} : vector<32x128xf32> to vector<4x128xf32>
    %12 = vector.extract_strided_slice %5 {offsets = [24, 0], sizes = [4, 128], strides = [1, 1]} : vector<32x128xf32> to vector<4x128xf32>
    %13 = vector.extract_strided_slice %5 {offsets = [28, 0], sizes = [4, 128], strides = [1, 1]} : vector<32x128xf32> to vector<4x128xf32>
    %c0_5 = arith.constant 0 : index
    %c0_6 = arith.constant 0 : index
    %14 = vector.load %arg3[%c0_5, %c0_6] : memref<32x128xf32, #tpu.memory_space<vmem>>, vector<32x128xf32>
    %cst_7 = arith.constant 0.000000e+00 : f32
    %15 = vector.broadcast %cst_7 : f32 to vector<4x32xf32>
    %cst_8 = arith.constant 0.000000e+00 : f32
    %16 = vector.broadcast %cst_8 : f32 to vector<4x32xf32>
    %cst_9 = arith.constant dense<0.000000e+00> : vector<4x128xf32>
    %17 = tpu.matmul %15, %14, %cst_9 {dimension_numbers = #tpu.dot_dimension_numbers<[1], [0], [0], [1], [0, 0, 1, 1], [], []>} : vector<4x32xf32>, vector<32x128xf32>, vector<4x128xf32> -> vector<4x128xf32>
    %18 = arith.addf %6, %17 : vector<4x128xf32>
    %cst_10 = arith.constant 5.000000e-01 : f32
    %19 = vector.broadcast %cst_10 : f32 to vector<4x128xf32>
    %20 = arith.mulf %19, %18 : vector<4x128xf32>
    %21 = math.tanh %20 : vector<4x128xf32>
    %cst_11 = arith.constant 5.000000e-01 : f32
    %22 = vector.broadcast %cst_11 : f32 to vector<4x128xf32>
    %23 = arith.mulf %22, %21 : vector<4x128xf32>
    %cst_12 = arith.constant 5.000000e-01 : f32
    %24 = vector.broadcast %cst_12 : f32 to vector<4x128xf32>
    %25 = arith.addf %23, %24 : vector<4x128xf32>
    %26 = math.tanh %18 : vector<4x128xf32>
    %27 = vector.extract_strided_slice %25 {offsets = [0, 0], sizes = [4, 32], strides = [1, 1]} : vector<4x128xf32> to vector<4x32xf32>
    %28 = vector.extract_strided_slice %25 {offsets = [0, 32], sizes = [4, 32], strides = [1, 1]} : vector<4x128xf32> to vector<4x32xf32>
    %29 = vector.extract_strided_slice %26 {offsets = [0, 64], sizes = [4, 32], strides = [1, 1]} : vector<4x128xf32> to vector<4x32xf32>
    %30 = vector.extract_strided_slice %25 {offsets = [0, 96], sizes = [4, 32], strides = [1, 1]} : vector<4x128xf32> to vector<4x32xf32>
    %31 = arith.mulf %28, %16 : vector<4x32xf32>
    %32 = arith.mulf %27, %29 : vector<4x32xf32>
    %33 = arith.addf %31, %32 : vector<4x32xf32>
    %34 = math.tanh %33 : vector<4x32xf32>
    %35 = arith.mulf %30, %34 : vector<4x32xf32>
    %cst_13 = arith.constant dense<0.000000e+00> : vector<4x128xf32>
    %36 = tpu.matmul %35, %14, %cst_13 {dimension_numbers = #tpu.dot_dimension_numbers<[1], [0], [0], [1], [0, 0, 1, 1], [], []>} : vector<4x32xf32>, vector<32x128xf32>, vector<4x128xf32> -> vector<4x128xf32>
    %37 = arith.addf %7, %36 : vector<4x128xf32>
    %cst_14 = arith.constant 5.000000e-01 : f32
    %38 = vector.broadcast %cst_14 : f32 to vector<4x128xf32>
    %39 = arith.mulf %38, %37 : vector<4x128xf32>
    %40 = math.tanh %39 : vector<4x128xf32>
    %cst_15 = arith.constant 5.000000e-01 : f32
    %41 = vector.broadcast %cst_15 : f32 to vector<4x128xf32>
    %42 = arith.mulf %41, %40 : vector<4x128xf32>
    %cst_16 = arith.constant 5.000000e-01 : f32
    %43 = vector.broadcast %cst_16 : f32 to vector<4x128xf32>
    %44 = arith.addf %42, %43 : vector<4x128xf32>
    %45 = math.tanh %37 : vector<4x128xf32>
    %46 = vector.extract_strided_slice %44 {offsets = [0, 0], sizes = [4, 32], strides = [1, 1]} : vector<4x128xf32> to vector<4x32xf32>
    %47 = vector.extract_strided_slice %44 {offsets = [0, 32], sizes = [4, 32], strides = [1, 1]} : vector<4x128xf32> to vector<4x32xf32>
    %48 = vector.extract_strided_slice %45 {offsets = [0, 64], sizes = [4, 32], strides = [1, 1]} : vector<4x128xf32> to vector<4x32xf32>
    %49 = vector.extract_strided_slice %44 {offsets = [0, 96], sizes = [4, 32], strides = [1, 1]} : vector<4x128xf32> to vector<4x32xf32>
    %50 = arith.mulf %47, %33 : vector<4x32xf32>
    %51 = arith.mulf %46, %48 : vector<4x32xf32>
    %52 = arith.addf %50, %51 : vector<4x32xf32>
    %53 = math.tanh %52 : vector<4x32xf32>
    %54 = arith.mulf %49, %53 : vector<4x32xf32>
    %cst_17 = arith.constant dense<0.000000e+00> : vector<4x128xf32>
    %55 = tpu.matmul %54, %14, %cst_17 {dimension_numbers = #tpu.dot_dimension_numbers<[1], [0], [0], [1], [0, 0, 1, 1], [], []>} : vector<4x32xf32>, vector<32x128xf32>, vector<4x128xf32> -> vector<4x128xf32>
    %56 = arith.addf %8, %55 : vector<4x128xf32>
    %cst_18 = arith.constant 5.000000e-01 : f32
    %57 = vector.broadcast %cst_18 : f32 to vector<4x128xf32>
    %58 = arith.mulf %57, %56 : vector<4x128xf32>
    %59 = math.tanh %58 : vector<4x128xf32>
    %cst_19 = arith.constant 5.000000e-01 : f32
    %60 = vector.broadcast %cst_19 : f32 to vector<4x128xf32>
    %61 = arith.mulf %60, %59 : vector<4x128xf32>
    %cst_20 = arith.constant 5.000000e-01 : f32
    %62 = vector.broadcast %cst_20 : f32 to vector<4x128xf32>
    %63 = arith.addf %61, %62 : vector<4x128xf32>
    %64 = math.tanh %56 : vector<4x128xf32>
    %65 = vector.extract_strided_slice %63 {offsets = [0, 0], sizes = [4, 32], strides = [1, 1]} : vector<4x128xf32> to vector<4x32xf32>
    %66 = vector.extract_strided_slice %63 {offsets = [0, 32], sizes = [4, 32], strides = [1, 1]} : vector<4x128xf32> to vector<4x32xf32>
    %67 = vector.extract_strided_slice %64 {offsets = [0, 64], sizes = [4, 32], strides = [1, 1]} : vector<4x128xf32> to vector<4x32xf32>
    %68 = vector.extract_strided_slice %63 {offsets = [0, 96], sizes = [4, 32], strides = [1, 1]} : vector<4x128xf32> to vector<4x32xf32>
    %69 = arith.mulf %66, %52 : vector<4x32xf32>
    %70 = arith.mulf %65, %67 : vector<4x32xf32>
    %71 = arith.addf %69, %70 : vector<4x32xf32>
    %72 = math.tanh %71 : vector<4x32xf32>
    %73 = arith.mulf %68, %72 : vector<4x32xf32>
    %cst_21 = arith.constant dense<0.000000e+00> : vector<4x128xf32>
    %74 = tpu.matmul %73, %14, %cst_21 {dimension_numbers = #tpu.dot_dimension_numbers<[1], [0], [0], [1], [0, 0, 1, 1], [], []>} : vector<4x32xf32>, vector<32x128xf32>, vector<4x128xf32> -> vector<4x128xf32>
    %75 = arith.addf %9, %74 : vector<4x128xf32>
    %cst_22 = arith.constant 5.000000e-01 : f32
    %76 = vector.broadcast %cst_22 : f32 to vector<4x128xf32>
    %77 = arith.mulf %76, %75 : vector<4x128xf32>
    %78 = math.tanh %77 : vector<4x128xf32>
    %cst_23 = arith.constant 5.000000e-01 : f32
    %79 = vector.broadcast %cst_23 : f32 to vector<4x128xf32>
    %80 = arith.mulf %79, %78 : vector<4x128xf32>
    %cst_24 = arith.constant 5.000000e-01 : f32
    %81 = vector.broadcast %cst_24 : f32 to vector<4x128xf32>
    %82 = arith.addf %80, %81 : vector<4x128xf32>
    %83 = math.tanh %75 : vector<4x128xf32>
    %84 = vector.extract_strided_slice %82 {offsets = [0, 0], sizes = [4, 32], strides = [1, 1]} : vector<4x128xf32> to vector<4x32xf32>
    %85 = vector.extract_strided_slice %82 {offsets = [0, 32], sizes = [4, 32], strides = [1, 1]} : vector<4x128xf32> to vector<4x32xf32>
    %86 = vector.extract_strided_slice %83 {offsets = [0, 64], sizes = [4, 32], strides = [1, 1]} : vector<4x128xf32> to vector<4x32xf32>
    %87 = vector.extract_strided_slice %82 {offsets = [0, 96], sizes = [4, 32], strides = [1, 1]} : vector<4x128xf32> to vector<4x32xf32>
    %88 = arith.mulf %85, %71 : vector<4x32xf32>
    %89 = arith.mulf %84, %86 : vector<4x32xf32>
    %90 = arith.addf %88, %89 : vector<4x32xf32>
    %91 = math.tanh %90 : vector<4x32xf32>
    %92 = arith.mulf %87, %91 : vector<4x32xf32>
    %cst_25 = arith.constant dense<0.000000e+00> : vector<4x128xf32>
    %93 = tpu.matmul %92, %14, %cst_25 {dimension_numbers = #tpu.dot_dimension_numbers<[1], [0], [0], [1], [0, 0, 1, 1], [], []>} : vector<4x32xf32>, vector<32x128xf32>, vector<4x128xf32> -> vector<4x128xf32>
    %94 = arith.addf %10, %93 : vector<4x128xf32>
    %cst_26 = arith.constant 5.000000e-01 : f32
    %95 = vector.broadcast %cst_26 : f32 to vector<4x128xf32>
    %96 = arith.mulf %95, %94 : vector<4x128xf32>
    %97 = math.tanh %96 : vector<4x128xf32>
    %cst_27 = arith.constant 5.000000e-01 : f32
    %98 = vector.broadcast %cst_27 : f32 to vector<4x128xf32>
    %99 = arith.mulf %98, %97 : vector<4x128xf32>
    %cst_28 = arith.constant 5.000000e-01 : f32
    %100 = vector.broadcast %cst_28 : f32 to vector<4x128xf32>
    %101 = arith.addf %99, %100 : vector<4x128xf32>
    %102 = math.tanh %94 : vector<4x128xf32>
    %103 = vector.extract_strided_slice %101 {offsets = [0, 0], sizes = [4, 32], strides = [1, 1]} : vector<4x128xf32> to vector<4x32xf32>
    %104 = vector.extract_strided_slice %101 {offsets = [0, 32], sizes = [4, 32], strides = [1, 1]} : vector<4x128xf32> to vector<4x32xf32>
    %105 = vector.extract_strided_slice %102 {offsets = [0, 64], sizes = [4, 32], strides = [1, 1]} : vector<4x128xf32> to vector<4x32xf32>
    %106 = vector.extract_strided_slice %101 {offsets = [0, 96], sizes = [4, 32], strides = [1, 1]} : vector<4x128xf32> to vector<4x32xf32>
    %107 = arith.mulf %104, %90 : vector<4x32xf32>
    %108 = arith.mulf %103, %105 : vector<4x32xf32>
    %109 = arith.addf %107, %108 : vector<4x32xf32>
    %110 = math.tanh %109 : vector<4x32xf32>
    %111 = arith.mulf %106, %110 : vector<4x32xf32>
    %cst_29 = arith.constant dense<0.000000e+00> : vector<4x128xf32>
    %112 = tpu.matmul %111, %14, %cst_29 {dimension_numbers = #tpu.dot_dimension_numbers<[1], [0], [0], [1], [0, 0, 1, 1], [], []>} : vector<4x32xf32>, vector<32x128xf32>, vector<4x128xf32> -> vector<4x128xf32>
    %113 = arith.addf %11, %112 : vector<4x128xf32>
    %cst_30 = arith.constant 5.000000e-01 : f32
    %114 = vector.broadcast %cst_30 : f32 to vector<4x128xf32>
    %115 = arith.mulf %114, %113 : vector<4x128xf32>
    %116 = math.tanh %115 : vector<4x128xf32>
    %cst_31 = arith.constant 5.000000e-01 : f32
    %117 = vector.broadcast %cst_31 : f32 to vector<4x128xf32>
    %118 = arith.mulf %117, %116 : vector<4x128xf32>
    %cst_32 = arith.constant 5.000000e-01 : f32
    %119 = vector.broadcast %cst_32 : f32 to vector<4x128xf32>
    %120 = arith.addf %118, %119 : vector<4x128xf32>
    %121 = math.tanh %113 : vector<4x128xf32>
    %122 = vector.extract_strided_slice %120 {offsets = [0, 0], sizes = [4, 32], strides = [1, 1]} : vector<4x128xf32> to vector<4x32xf32>
    %123 = vector.extract_strided_slice %120 {offsets = [0, 32], sizes = [4, 32], strides = [1, 1]} : vector<4x128xf32> to vector<4x32xf32>
    %124 = vector.extract_strided_slice %121 {offsets = [0, 64], sizes = [4, 32], strides = [1, 1]} : vector<4x128xf32> to vector<4x32xf32>
    %125 = vector.extract_strided_slice %120 {offsets = [0, 96], sizes = [4, 32], strides = [1, 1]} : vector<4x128xf32> to vector<4x32xf32>
    %126 = arith.mulf %123, %109 : vector<4x32xf32>
    %127 = arith.mulf %122, %124 : vector<4x32xf32>
    %128 = arith.addf %126, %127 : vector<4x32xf32>
    %129 = math.tanh %128 : vector<4x32xf32>
    %130 = arith.mulf %125, %129 : vector<4x32xf32>
    %cst_33 = arith.constant dense<0.000000e+00> : vector<4x128xf32>
    %131 = tpu.matmul %130, %14, %cst_33 {dimension_numbers = #tpu.dot_dimension_numbers<[1], [0], [0], [1], [0, 0, 1, 1], [], []>} : vector<4x32xf32>, vector<32x128xf32>, vector<4x128xf32> -> vector<4x128xf32>
    %132 = arith.addf %12, %131 : vector<4x128xf32>
    %cst_34 = arith.constant 5.000000e-01 : f32
    %133 = vector.broadcast %cst_34 : f32 to vector<4x128xf32>
    %134 = arith.mulf %133, %132 : vector<4x128xf32>
    %135 = math.tanh %134 : vector<4x128xf32>
    %cst_35 = arith.constant 5.000000e-01 : f32
    %136 = vector.broadcast %cst_35 : f32 to vector<4x128xf32>
    %137 = arith.mulf %136, %135 : vector<4x128xf32>
    %cst_36 = arith.constant 5.000000e-01 : f32
    %138 = vector.broadcast %cst_36 : f32 to vector<4x128xf32>
    %139 = arith.addf %137, %138 : vector<4x128xf32>
    %140 = math.tanh %132 : vector<4x128xf32>
    %141 = vector.extract_strided_slice %139 {offsets = [0, 0], sizes = [4, 32], strides = [1, 1]} : vector<4x128xf32> to vector<4x32xf32>
    %142 = vector.extract_strided_slice %139 {offsets = [0, 32], sizes = [4, 32], strides = [1, 1]} : vector<4x128xf32> to vector<4x32xf32>
    %143 = vector.extract_strided_slice %140 {offsets = [0, 64], sizes = [4, 32], strides = [1, 1]} : vector<4x128xf32> to vector<4x32xf32>
    %144 = vector.extract_strided_slice %139 {offsets = [0, 96], sizes = [4, 32], strides = [1, 1]} : vector<4x128xf32> to vector<4x32xf32>
    %145 = arith.mulf %142, %128 : vector<4x32xf32>
    %146 = arith.mulf %141, %143 : vector<4x32xf32>
    %147 = arith.addf %145, %146 : vector<4x32xf32>
    %148 = math.tanh %147 : vector<4x32xf32>
    %149 = arith.mulf %144, %148 : vector<4x32xf32>
    %cst_37 = arith.constant dense<0.000000e+00> : vector<4x128xf32>
    %150 = tpu.matmul %149, %14, %cst_37 {dimension_numbers = #tpu.dot_dimension_numbers<[1], [0], [0], [1], [0, 0, 1, 1], [], []>} : vector<4x32xf32>, vector<32x128xf32>, vector<4x128xf32> -> vector<4x128xf32>
    %151 = arith.addf %13, %150 : vector<4x128xf32>
    %cst_38 = arith.constant 5.000000e-01 : f32
    %152 = vector.broadcast %cst_38 : f32 to vector<4x128xf32>
    %153 = arith.mulf %152, %151 : vector<4x128xf32>
    %154 = math.tanh %153 : vector<4x128xf32>
    %cst_39 = arith.constant 5.000000e-01 : f32
    %155 = vector.broadcast %cst_39 : f32 to vector<4x128xf32>
    %156 = arith.mulf %155, %154 : vector<4x128xf32>
    %cst_40 = arith.constant 5.000000e-01 : f32
    %157 = vector.broadcast %cst_40 : f32 to vector<4x128xf32>
    %158 = arith.addf %156, %157 : vector<4x128xf32>
    %159 = math.tanh %151 : vector<4x128xf32>
    %160 = vector.extract_strided_slice %158 {offsets = [0, 0], sizes = [4, 32], strides = [1, 1]} : vector<4x128xf32> to vector<4x32xf32>
    %161 = vector.extract_strided_slice %158 {offsets = [0, 32], sizes = [4, 32], strides = [1, 1]} : vector<4x128xf32> to vector<4x32xf32>
    %162 = vector.extract_strided_slice %159 {offsets = [0, 64], sizes = [4, 32], strides = [1, 1]} : vector<4x128xf32> to vector<4x32xf32>
    %163 = vector.extract_strided_slice %158 {offsets = [0, 96], sizes = [4, 32], strides = [1, 1]} : vector<4x128xf32> to vector<4x32xf32>
    %164 = arith.mulf %161, %147 : vector<4x32xf32>
    %165 = arith.mulf %160, %162 : vector<4x32xf32>
    %166 = arith.addf %164, %165 : vector<4x32xf32>
    %167 = math.tanh %166 : vector<4x32xf32>
    %168 = arith.mulf %163, %167 : vector<4x32xf32>
    %169 = vector.extract_strided_slice %168 {offsets = [0, 0], sizes = [2, 32], strides = [1, 1]} : vector<4x32xf32> to vector<2x32xf32>
    %c0_41 = arith.constant 0 : index
    %c0_42 = arith.constant 0 : index
    %c0_43 = arith.constant 0 : index
    %170 = vector.load %arg5[%c0_41, %c0_42, %c0_43] : memref<2x32x8xf32, #tpu.memory_space<vmem>>, vector<1x32x8xf32>
    %171 = vector.shape_cast %170 : vector<1x32x8xf32> to vector<32x8xf32>
    %cst_44 = arith.constant dense<0.000000e+00> : vector<2x8xf32>
    %172 = tpu.matmul %169, %171, %cst_44 {dimension_numbers = #tpu.dot_dimension_numbers<[1], [0], [0], [1], [0, 0, 1, 1], [], []>} : vector<2x32xf32>, vector<32x8xf32>, vector<2x8xf32> -> vector<2x8xf32>
    %c0_45 = arith.constant 0 : index
    %c0_46 = arith.constant 0 : index
    %c0_47 = arith.constant 0 : index
    %173 = vector.load %arg6[%c0_45, %c0_46, %c0_47] : memref<2x1x8xf32, #tpu.memory_space<vmem>>, vector<1x1x8xf32>
    %174 = vector.shape_cast %173 : vector<1x1x8xf32> to vector<1x8xf32>
    %175 = vector.broadcast %174 : vector<1x8xf32> to vector<2x8xf32>
    %176 = arith.addf %172, %175 : vector<2x8xf32>
    %177 = vector.extract_strided_slice %168 {offsets = [2, 0], sizes = [2, 32], strides = [1, 1]} : vector<4x32xf32> to vector<2x32xf32>
    %c1 = arith.constant 1 : index
    %c0_48 = arith.constant 0 : index
    %c0_49 = arith.constant 0 : index
    %178 = vector.load %arg5[%c1, %c0_48, %c0_49] : memref<2x32x8xf32, #tpu.memory_space<vmem>>, vector<1x32x8xf32>
    %179 = vector.shape_cast %178 : vector<1x32x8xf32> to vector<32x8xf32>
    %cst_50 = arith.constant dense<0.000000e+00> : vector<2x8xf32>
    %180 = tpu.matmul %177, %179, %cst_50 {dimension_numbers = #tpu.dot_dimension_numbers<[1], [0], [0], [1], [0, 0, 1, 1], [], []>} : vector<2x32xf32>, vector<32x8xf32>, vector<2x8xf32> -> vector<2x8xf32>
    %c1_51 = arith.constant 1 : index
    %c0_52 = arith.constant 0 : index
    %c0_53 = arith.constant 0 : index
    %181 = vector.load %arg6[%c1_51, %c0_52, %c0_53] : memref<2x1x8xf32, #tpu.memory_space<vmem>>, vector<1x1x8xf32>
    %182 = vector.shape_cast %181 : vector<1x1x8xf32> to vector<1x8xf32>
    %183 = vector.broadcast %182 : vector<1x8xf32> to vector<2x8xf32>
    %184 = arith.addf %180, %183 : vector<2x8xf32>
    %185 = tpu.concatenate %176, %184 in 0 : vector<2x8xf32>, vector<2x8xf32> -> vector<4x8xf32>
    %c0_54 = arith.constant 0 : index
    %c0_55 = arith.constant 0 : index
    %186 = vector.load %arg7[%c0_54, %c0_55] : memref<4x8xf32, #tpu.memory_space<vmem>>, vector<4x8xf32>
    tpu.vector_store %arg7[%c0_54, %c0_55], %185 {strides = array<i32>} : memref<4x8xf32, #tpu.memory_space<vmem>>, vector<4x8xf32>,
    return
  }
  func.func @transform_0(%arg0: i32) -> (i32, i32) {
    %c0_i32 = arith.constant 0 : i32
    %c0_i32_0 = arith.constant 0 : i32
    %c0_i32_1 = arith.constant 0 : i32
    return %c0_i32, %c0_i32_0 : i32, i32
  }
  func.func @transform_1(%arg0: i32) -> (i32, i32) {
    %c0_i32 = arith.constant 0 : i32
    %c0_i32_0 = arith.constant 0 : i32
    %c0_i32_1 = arith.constant 0 : i32
    return %c0_i32, %c0_i32_0 : i32, i32
  }
  func.func @transform_2(%arg0: i32) -> (i32, i32) {
    %c0_i32 = arith.constant 0 : i32
    %c0_i32_0 = arith.constant 0 : i32
    %c0_i32_1 = arith.constant 0 : i32
    return %c0_i32, %c0_i32_0 : i32, i32
  }
  func.func @transform_3(%arg0: i32) -> (i32, i32) {
    %c0_i32 = arith.constant 0 : i32
    %c0_i32_0 = arith.constant 0 : i32
    %c0_i32_1 = arith.constant 0 : i32
    return %c0_i32, %c0_i32_0 : i32, i32
  }
  func.func @transform_4(%arg0: i32) -> (i32, i32, i32) {
    %c0_i32 = arith.constant 0 : i32
    %c0_i32_0 = arith.constant 0 : i32
    %c0_i32_1 = arith.constant 0 : i32
    %c0_i32_2 = arith.constant 0 : i32
    return %c0_i32, %c0_i32_0, %c0_i32_1 : i32, i32, i32
  }
  func.func @transform_5(%arg0: i32) -> (i32, i32, i32) {
    %c0_i32 = arith.constant 0 : i32
    %c0_i32_0 = arith.constant 0 : i32
    %c0_i32_1 = arith.constant 0 : i32
    %c0_i32_2 = arith.constant 0 : i32
    return %c0_i32, %c0_i32_0, %c0_i32_1 : i32, i32, i32
  }
  func.func @transform_6(%arg0: i32) -> (i32, i32) {
    %c0_i32 = arith.constant 0 : i32
    %c0_i32_0 = arith.constant 0 : i32
    %c0_i32_1 = arith.constant 0 : i32
    return %c0_i32, %c0_i32_0 : i32, i32
  }
}

</mosaic_0001>

<llo_original>
// kernel: tpu_custom_call.1
$region0: #{tpu_custom_call.1}
  #allocation0 [shape = 'u32[]', space=smem, size = 0x4, offset = 0x4, fixed_abs, tag = 'smem constant byte address 0x4 - core index']
  #allocation1 [shape = 'u32[144,128]{1,0:T(1,128)}', space=vmem, size = 0x12000, scoped, tag = 'internal scratch']
  %s0 = inlined_call_operand.vmem [shape: f32[32,15], index: 0, kind: input, shape index: {}]
  %s1 = inlined_call_operand.vmem [shape: f32[15,128], index: 1, kind: input, shape index: {}]
  %s2 = inlined_call_operand.vmem [shape: f32[32,128], index: 2, kind: input, shape index: {}]
  %s3 = inlined_call_operand.vmem [shape: f32[1,128], index: 3, kind: input, shape index: {}]
  %s4 = inlined_call_operand.vmem [shape: f32[2,32,8], index: 4, kind: input, shape index: {}]
  %s5 = inlined_call_operand.vmem [shape: f32[2,1,8], index: 5, kind: input, shape index: {}]
  %s6 = inlined_call_operand.hbm [shape: f32[4,8], index: 6, kind: output, shape index: {}]
  %s7 = sld [smem:[#allocation0]]
  $region34: #{tpu_custom_call.1} parent=0
    _
  %s9 = ssub.s32 1, %s7
  %s10 = scalar_select 0, %s9, %s7
  $region1: #{tpu_custom_call.1} parent=0
    #allocation2 [shape = 'u8[2048]{0}', space=vmem, size = 0x800, scoped, tag = 'output window, operand 0, single buffered']
    #allocation3 [shape = 's32[1]{0}', space=sflag, size = 0x4, scoped, tag = 'scoped memory for tpu_custom_call.1']
    %11 = vsyncpa [#allocation3], 0
    // Predicated region
    $region2: #{tpu_custom_call.1} parent=1 // pred_check
      _
    $region3: #{tpu_custom_call.1} parent=1 // pred_check_branch
      %13 = sbr.rel (0) target = $region5
    $region4: #{tpu_custom_call.1} parent=1 // pred_region
      _
    $region5: #{tpu_custom_call.1} parent=1 // pred_fallthru
      _
    // Predicated region
    $region6: #{tpu_custom_call.1} parent=1 // pred_check
      _
    $region7: #{tpu_custom_call.1} parent=1 // pred_check_branch
      %15 = sbr.rel (0) target = $region9
    $region8: #{tpu_custom_call.1} parent=1 // pred_region
      _
    $region9: #{tpu_custom_call.1} parent=1 // pred_fallthru
      _
    // Predicated region
    $region10: #{tpu_custom_call.1} parent=1 // pred_check
      _
    $region11: #{tpu_custom_call.1} parent=1 // pred_check_branch
      %17 = sbr.rel (0) target = $region13
    $region12: #{tpu_custom_call.1} parent=1 // pred_region
      _
    $region13: #{tpu_custom_call.1} parent=1 // pred_fallthru
      _
    // Predicated region
    $region14: #{tpu_custom_call.1} parent=1 // pred_check
      _
    $region15: #{tpu_custom_call.1} parent=1 // pred_check_branch
      %19 = sbr.rel (0) target = $region17
    $region16: #{tpu_custom_call.1} parent=1 // pred_region
      _
    $region17: #{tpu_custom_call.1} parent=1 // pred_fallthru
      _
    // Predicated region
    $region18: #{tpu_custom_call.1} parent=1 // pred_check
      _
    $region19: #{tpu_custom_call.1} parent=1 // pred_check_branch
      %21 = sbr.rel (0) target = $region21
    $region20: #{tpu_custom_call.1} parent=1 // pred_region
      _
    $region21: #{tpu_custom_call.1} parent=1 // pred_fallthru
      _
    // Predicated region
    $region22: #{tpu_custom_call.1} parent=1 // pred_check
      _
    $region23: #{tpu_custom_call.1} parent=1 // pred_check_branch
      %23 = sbr.rel (0) target = $region25
    $region24: #{tpu_custom_call.1} parent=1 // pred_region
      _
    $region25: #{tpu_custom_call.1} parent=1 // pred_fallthru
      _
    %v24 = vld [vmem:[%s0] sm:$0xff]
    %v25 = vld [vmem:[%s0 + $0x8] sm:$0xff]
    %v26 = vld [vmem:[%s0 + $0x10] sm:$0xff]
    %v27 = vld [vmem:[%s0 + $0x18] sm:$0xff]
    %v28 = vld [vmem:[%s1] sm:$0xff]
    %v29 = vld [vmem:[%s1 + $0x8] sm:$0x7f]
    %v30 = vld [vmem:[%s3] sm:$0x1]
    %v32 = vlaneseq
    %v33 = vshrl.u32 %v32, 7
    %v34 = vsub.s32 0, %v33
    %v35 = vrot.slane %v30, %v34
    %vm37 = vcmask 121856
    %v39 = vsel %vm37, %v24, 0
    %v42 = vsel %vm37, %v25, 0
    %v45 = vsel %vm37, %v26, 0
    %v48 = vsel %vm37, %v27, 0
    %vm50 = vcmask 1046528
    %v52 = vsel %vm50, %v29, 0
    %54 = vmatprep.subr.mxu0 0.0
    %55 = vmatpush1.msra.mxu0 %v28
    %56 = vmatprep.subr.mxu0 0.0
    %57 = vmatpush1.msra.mxu0 %v52
    %58 = vmatprep.subr.mxu0 0.0
    %59 = vmatpush1.msra.mxu0 0.0
    %60 = vmatprep.subr.mxu0 0.0
    %61 = vmatpush1.msra.mxu0 0.0
    %62 = vmatprep.subr.mxu0 0.0
    %63 = vmatpush1.msra.mxu0 0.0
    %64 = vmatprep.subr.mxu0 0.0
    %65 = vmatpush1.msra.mxu0 0.0
    %66 = vmatprep.subr.mxu0 0.0
    %67 = vmatpush1.msra.mxu0 0.0
    %68 = vmatprep.subr.mxu0 0.0
    %69 = vmatpush1.msra.mxu0 0.0
    %70 = vmatprep.subr.mxu0 0.0
    %71 = vmatpush1.msra.mxu0 0.0
    %72 = vmatprep.subr.mxu0 0.0
    %73 = vmatpush1.msra.mxu0 0.0
    %74 = vmatprep.subr.mxu0 0.0
    %75 = vmatpush1.msra.mxu0 0.0
    %76 = vmatprep.subr.mxu0 0.0
    %77 = vmatpush1.msra.mxu0 0.0
    %78 = vmatprep.subr.mxu0 0.0
    %79 = vmatpush1.msra.mxu0 0.0
    %80 = vmatprep.subr.mxu0 0.0
    %81 = vmatpush1.msra.mxu0 0.0
    %82 = vmatprep.subr.mxu0 0.0
    %83 = vmatpush1.msra.mxu0 0.0
    %84 = vmatprep.subr.mxu0 0.0
    %85 = vmatpush1.msra.mxu0 0.0
    %86 = vmatprep.subr.mxu0 0.0
    %87 = vmatpush1.msra.mxu0 0.0
    %88 = vmatprep.subr.mxu0 0.0
    %89 = vmatpush1.msra.mxu0 0.0
    %90 = vmatprep.subr.mxu0 0.0
    %91 = vmatpush1.msra.mxu0 0.0
    %92 = vmatprep.subr.mxu0 0.0
    %93 = vmatpush1.msra.mxu0 0.0
    %94 = vmatprep.subr.mxu0 0.0
    %95 = vmatpush1.msra.mxu0 0.0
    %96 = vmatprep.subr.mxu0 0.0
    %97 = vmatpush1.msra.mxu0 0.0
    %98 = vmatprep.subr.mxu0 0.0
    %99 = vmatpush1.msra.mxu0 0.0
    %100 = vmatprep.subr.mxu0 0.0
    %101 = vmatpush1.msra.mxu0 0.0
    %102 = vmatprep.subr.mxu0 0.0
    %103 = vmatpush1.msra.mxu0 0.0
    %104 = vmatprep.subr.mxu0 0.0
    %105 = vmatpush1.msra.mxu0 0.0
    %106 = vmatprep.subr.mxu0 0.0
    %107 = vmatpush1.msra.mxu0 0.0
    %108 = vmatprep.subr.mxu0 0.0
    %109 = vmatpush1.msra.mxu0 0.0
    %110 = vmatprep.subr.mxu0 0.0
    %111 = vmatpush1.msra.mxu0 0.0
    %112 = vmatprep.subr.mxu0 0.0
    %113 = vmatpush1.msra.mxu0 0.0
    %114 = vmatprep.subr.mxu0 0.0
    %115 = vmatpush1.msra.mxu0 0.0
    %116 = vmatprep.subr.mxu0 0.0
    %117 = vmatpush1.msra.mxu0 0.0
    %118 = vmatprep.mubr.f32.mxu0 0.0
    %119 = vmatmul.mubr.f32.gmra.mrb[0].mxu0 %v39
    %v120 = vpop.f32.mrb[0].mxu0
    %v121 = vadd.f32 %v35, %v120
    %v122 = vpop.f32.mrb[0].mxu0
    %123 = vmatprep.mubr.f32.mxu0 0.0
    %124 = vmatmul.mubr.f32.gmra.mrb[0].mxu0 %v42
    %v125 = vpop.f32.mrb[0].mxu0
    %v126 = vadd.f32 %v35, %v125
    %v127 = vpop.f32.mrb[0].mxu0
    %128 = vmatprep.mubr.f32.mxu0 0.0
    %129 = vmatmul.mubr.f32.gmra.mrb[0].mxu0 %v45
    %v130 = vpop.f32.mrb[0].mxu0
    %v131 = vadd.f32 %v35, %v130
    %v132 = vpop.f32.mrb[0].mxu0
    %133 = vmatprep.mubr.f32.mxu0 0.0
    %134 = vmatmul.mubr.f32.gmra.mrb[0].mxu0 %v48
    %v135 = vpop.f32.mrb[0].mxu0
    %v136 = vadd.f32 %v35, %v135
    %v137 = vpop.f32.mrb[0].mxu0
    %138 = vdwg.mxu0
    %v139 = vld [vmem:[%s2] sm:$0xff]
    %v140 = vld [vmem:[%s2 + $0x8] sm:$0xff]
    %v141 = vld [vmem:[%s2 + $0x10] sm:$0xff]
    %v142 = vld [vmem:[%s2 + $0x18] sm:$0xff]
    %vm143 = vcmask 261120
    %v145 = vsel %vm143, 0.0, 0
    %147 = vmatprep.subr.mxu0 0.0
    %148 = vmatpush1.msra.mxu0 %v139
    %149 = vmatprep.subr.mxu0 0.0
    %150 = vmatpush1.msra.mxu0 %v140
    %151 = vmatprep.subr.mxu0 0.0
    %152 = vmatpush1.msra.mxu0 %v141
    %153 = vmatprep.subr.mxu0 0.0
    %154 = vmatpush1.msra.mxu0 %v142
    %155 = vmatprep.subr.mxu0 0.0
    %156 = vmatpush1.msra.mxu0 0.0
    %157 = vmatprep.subr.mxu0 0.0
    %158 = vmatpush1.msra.mxu0 0.0
    %159 = vmatprep.subr.mxu0 0.0
    %160 = vmatpush1.msra.mxu0 0.0
    %161 = vmatprep.subr.mxu0 0.0
    %162 = vmatpush1.msra.mxu0 0.0
    %163 = vmatprep.subr.mxu0 0.0
    %164 = vmatpush1.msra.mxu0 0.0
    %165 = vmatprep.subr.mxu0 0.0
    %166 = vmatpush1.msra.mxu0 0.0
    %167 = vmatprep.subr.mxu0 0.0
    %168 = vmatpush1.msra.mxu0 0.0
    %169 = vmatprep.subr.mxu0 0.0
    %170 = vmatpush1.msra.mxu0 0.0
    %171 = vmatprep.subr.mxu0 0.0
    %172 = vmatpush1.msra.mxu0 0.0
    %173 = vmatprep.subr.mxu0 0.0
    %174 = vmatpush1.msra.mxu0 0.0
    %175 = vmatprep.subr.mxu0 0.0
    %176 = vmatpush1.msra.mxu0 0.0
    %177 = vmatprep.subr.mxu0 0.0
    %178 = vmatpush1.msra.mxu0 0.0
    %179 = vmatprep.subr.mxu0 0.0
    %180 = vmatpush1.msra.mxu0 0.0
    %181 = vmatprep.subr.mxu0 0.0
    %182 = vmatpush1.msra.mxu0 0.0
    %183 = vmatprep.subr.mxu0 0.0
    %184 = vmatpush1.msra.mxu0 0.0
    %185 = vmatprep.subr.mxu0 0.0
    %186 = vmatpush1.msra.mxu0 0.0
    %187 = vmatprep.subr.mxu0 0.0
    %188 = vmatpush1.msra.mxu0 0.0
    %189 = vmatprep.subr.mxu0 0.0
    %190 = vmatpush1.msra.mxu0 0.0
    %191 = vmatprep.subr.mxu0 0.0
    %192 = vmatpush1.msra.mxu0 0.0
    %193 = vmatprep.subr.mxu0 0.0
    %194 = vmatpush1.msra.mxu0 0.0
    %195 = vmatprep.subr.mxu0 0.0
    %196 = vmatpush1.msra.mxu0 0.0
    %197 = vmatprep.subr.mxu0 0.0
    %198 = vmatpush1.msra.mxu0 0.0
    %199 = vmatprep.subr.mxu0 0.0
    %200 = vmatpush1.msra.mxu0 0.0
    %201 = vmatprep.subr.mxu0 0.0
    %202 = vmatpush1.msra.mxu0 0.0
    %203 = vmatprep.subr.mxu0 0.0
    %204 = vmatpush1.msra.mxu0 0.0
    %205 = vmatprep.subr.mxu0 0.0
    %206 = vmatpush1.msra.mxu0 0.0
    %207 = vmatprep.subr.mxu0 0.0
    %208 = vmatpush1.msra.mxu0 0.0
    %209 = vmatprep.subr.mxu0 0.0
    %210 = vmatpush1.msra.mxu0 0.0
    %211 = vmatprep.mubr.f32.mxu0 0.0
    %212 = vmatmul.mubr.f32.gmra.mrb[0].mxu0 %v145
    %v213 = vpop.f32.mrb[0].mxu0
    %v214 = vadd.f32 0.0, %v213
    %v215 = vpop.f32.mrb[0].mxu0
    %216 = vdwg.mxu0
    %v217 = vadd.f32 %v121, %v214
    %v218 = vmul.f32 %v217, 0.5
    %v219 = vtanh.pop %v218
    %v220 = vmul.f32 %v219, 0.5
    %v221 = vadd.f32 %v220, 0.5
    %v222 = vtanh.pop %v217
    %v223 = vmul.f32 %v221, 0.0
    %225 = vrot.lane.b32.xlu0 %v222, 64
    %v226 = vpop.permute.xlu0 %225
    %v228 = vmul.f32 %v221, %v226
    %230 = vrot.lane.b32.xlu0 %v228, 32
    %v231 = vpop.permute.xlu0 %230
    %v233 = vadd.f32 %v223, %v231
    %v234 = vtanh.pop %v233
    %236 = vrot.lane.b32.xlu0 %v234, 64
    %v237 = vpop.permute.xlu0 %236
    %v239 = vmul.f32 %v221, %v237
    %241 = vrot.lane.b32.xlu0 %v239, 32
    %v242 = vpop.permute.xlu0 %241
    %v243 = vsel %vm143, %v242, 0
    %245 = vmatprep.subr.mxu0 0.0
    %246 = vmatpush1.msra.mxu0 %v139
    %247 = vmatprep.subr.mxu0 0.0
    %248 = vmatpush1.msra.mxu0 %v140
    %249 = vmatprep.subr.mxu0 0.0
    %250 = vmatpush1.msra.mxu0 %v141
    %251 = vmatprep.subr.mxu0 0.0
    %252 = vmatpush1.msra.mxu0 %v142
    %253 = vmatprep.subr.mxu0 0.0
    %254 = vmatpush1.msra.mxu0 0.0
    %255 = vmatprep.subr.mxu0 0.0
    %256 = vmatpush1.msra.mxu0 0.0
    %257 = vmatprep.subr.mxu0 0.0
    %258 = vmatpush1.msra.mxu0 0.0
    %259 = vmatprep.subr.mxu0 0.0
    %260 = vmatpush1.msra.mxu0 0.0
    %261 = vmatprep.subr.mxu0 0.0
    %262 = vmatpush1.msra.mxu0 0.0
    %263 = vmatprep.subr.mxu0 0.0
    %264 = vmatpush1.msra.mxu0 0.0
    %265 = vmatprep.subr.mxu0 0.0
    %266 = vmatpush1.msra.mxu0 0.0
    %267 = vmatprep.subr.mxu0 0.0
    %268 = vmatpush1.msra.mxu0 0.0
    %269 = vmatprep.subr.mxu0 0.0
    %270 = vmatpush1.msra.mxu0 0.0
    %271 = vmatprep.subr.mxu0 0.0
    %272 = vmatpush1.msra.mxu0 0.0
    %273 = vmatprep.subr.mxu0 0.0
    %274 = vmatpush1.msra.mxu0 0.0
    %275 = vmatprep.subr.mxu0 0.0
    %276 = vmatpush1.msra.mxu0 0.0
    %277 = vmatprep.subr.mxu0 0.0
    %278 = vmatpush1.msra.mxu0 0.0
    %279 = vmatprep.subr.mxu0 0.0
    %280 = vmatpush1.msra.mxu0 0.0
    %281 = vmatprep.subr.mxu0 0.0
    %282 = vmatpush1.msra.mxu0 0.0
    %283 = vmatprep.subr.mxu0 0.0
    %284 = vmatpush1.msra.mxu0 0.0
    %285 = vmatprep.subr.mxu0 0.0
    %286 = vmatpush1.msra.mxu0 0.0
    %287 = vmatprep.subr.mxu0 0.0
    %288 = vmatpush1.msra.mxu0 0.0
    %289 = vmatprep.subr.mxu0 0.0
    %290 = vmatpush1.msra.mxu0 0.0
    %291 = vmatprep.subr.mxu0 0.0
    %292 = vmatpush1.msra.mxu0 0.0
    %293 = vmatprep.subr.mxu0 0.0
    %294 = vmatpush1.msra.mxu0 0.0
    %295 = vmatprep.subr.mxu0 0.0
    %296 = vmatpush1.msra.mxu0 0.0
    %297 = vmatprep.subr.mxu0 0.0
    %298 = vmatpush1.msra.mxu0 0.0
    %299 = vmatprep.subr.mxu0 0.0
    %300 = vmatpush1.msra.mxu0 0.0
    %301 = vmatprep.subr.mxu0 0.0
    %302 = vmatpush1.msra.mxu0 0.0
    %303 = vmatprep.subr.mxu0 0.0
    %304 = vmatpush1.msra.mxu0 0.0
    %305 = vmatprep.subr.mxu0 0.0
    %306 = vmatpush1.msra.mxu0 0.0
    %307 = vmatprep.subr.mxu0 0.0
    %308 = vmatpush1.msra.mxu0 0.0
    %309 = vmatprep.mubr.f32.mxu0 0.0
    %310 = vmatmul.mubr.f32.gmra.mrb[0].mxu0 %v243
    %v311 = vpop.f32.mrb[0].mxu0
    %v312 = vadd.f32 0.0, %v311
    %v313 = vpop.f32.mrb[0].mxu0
    %314 = vdwg.mxu0
    %v316 = vrot.slane %v312, 4
    %v318 = vadd.f32 %v121, %v316
    %v319 = vmul.f32 %v318, 0.5
    %v320 = vtanh.pop %v319
    %v321 = vmul.f32 %v320, 0.5
    %v322 = vadd.f32 %v321, 0.5
    %v323 = vtanh.pop %v318
    %v325 = vrot.slane %v233, 4
    %v327 = vmul.f32 %v322, %v325
    %329 = vrot.lane.b32.xlu0 %v323, 64
    %v330 = vpop.permute.xlu0 %329
    %v332 = vmul.f32 %v322, %v330
    %334 = vrot.lane.b32.xlu0 %v332, 32
    %v335 = vpop.permute.xlu0 %334
    %v337 = vadd.f32 %v327, %v335
    %v338 = vtanh.pop %v337
    %340 = vrot.lane.b32.xlu0 %v338, 64
    %v341 = vpop.permute.xlu0 %340
    %v343 = vmul.f32 %v322, %v341
    %v345 = vrot.slane %v343, 4
    %346 = vrot.lane.b32.xlu0 %v345, 32
    %v347 = vpop.permute.xlu0 %346
    %v348 = vsel %vm143, %v347, 0
    %350 = vmatprep.subr.mxu0 0.0
    %351 = vmatpush1.msra.mxu0 %v139
    %352 = vmatprep.subr.mxu0 0.0
    %353 = vmatpush1.msra.mxu0 %v140
    %354 = vmatprep.subr.mxu0 0.0
    %355 = vmatpush1.msra.mxu0 %v141
    %356 = vmatprep.subr.mxu0 0.0
    %357 = vmatpush1.msra.mxu0 %v142
    %358 = vmatprep.subr.mxu0 0.0
    %359 = vmatpush1.msra.mxu0 0.0
    %360 = vmatprep.subr.mxu0 0.0
    %361 = vmatpush1.msra.mxu0 0.0
    %362 = vmatprep.subr.mxu0 0.0
    %363 = vmatpush1.msra.mxu0 0.0
    %364 = vmatprep.subr.mxu0 0.0
    %365 = vmatpush1.msra.mxu0 0.0
    %366 = vmatprep.subr.mxu0 0.0
    %367 = vmatpush1.msra.mxu0 0.0
    %368 = vmatprep.subr.mxu0 0.0
    %369 = vmatpush1.msra.mxu0 0.0
    %370 = vmatprep.subr.mxu0 0.0
    %371 = vmatpush1.msra.mxu0 0.0
    %372 = vmatprep.subr.mxu0 0.0
    %373 = vmatpush1.msra.mxu0 0.0
    %374 = vmatprep.subr.mxu0 0.0
    %375 = vmatpush1.msra.mxu0 0.0
    %376 = vmatprep.subr.mxu0 0.0
    %377 = vmatpush1.msra.mxu0 0.0
    %378 = vmatprep.subr.mxu0 0.0
    %379 = vmatpush1.msra.mxu0 0.0
    %380 = vmatprep.subr.mxu0 0.0
    %381 = vmatpush1.msra.mxu0 0.0
    %382 = vmatprep.subr.mxu0 0.0
    %383 = vmatpush1.msra.mxu0 0.0
    %384 = vmatprep.subr.mxu0 0.0
    %385 = vmatpush1.msra.mxu0 0.0
    %386 = vmatprep.subr.mxu0 0.0
    %387 = vmatpush1.msra.mxu0 0.0
    %388 = vmatprep.subr.mxu0 0.0
    %389 = vmatpush1.msra.mxu0 0.0
    %390 = vmatprep.subr.mxu0 0.0
    %391 = vmatpush1.msra.mxu0 0.0
    %392 = vmatprep.subr.mxu0 0.0
    %393 = vmatpush1.msra.mxu0 0.0
    %394 = vmatprep.subr.mxu0 0.0
    %395 = vmatpush1.msra.mxu0 0.0
    %396 = vmatprep.subr.mxu0 0.0
    %397 = vmatpush1.msra.mxu0 0.0
    %398 = vmatprep.subr.mxu0 0.0
    %399 = vmatpush1.msra.mxu0 0.0
    %400 = vmatprep.subr.mxu0 0.0
    %401 = vmatpush1.msra.mxu0 0.0
    %402 = vmatprep.subr.mxu0 0.0
    %403 = vmatpush1.msra.mxu0 0.0
    %404 = vmatprep.subr.mxu0 0.0
    %405 = vmatpush1.msra.mxu0 0.0
    %406 = vmatprep.subr.mxu0 0.0
    %407 = vmatpush1.msra.mxu0 0.0
    %408 = vmatprep.subr.mxu0 0.0
    %409 = vmatpush1.msra.mxu0 0.0
    %410 = vmatprep.subr.mxu0 0.0
    %411 = vmatpush1.msra.mxu0 0.0
    %412 = vmatprep.subr.mxu0 0.0
    %413 = vmatpush1.msra.mxu0 0.0
    %414 = vmatprep.mubr.f32.mxu0 0.0
    %415 = vmatmul.mubr.f32.gmra.mrb[0].mxu0 %v348
    %v416 = vpop.f32.mrb[0].mxu0
    %v417 = vadd.f32 0.0, %v416
    %v418 = vpop.f32.mrb[0].mxu0
    %419 = vdwg.mxu0
    %v420 = vadd.f32 %v126, %v417
    %v421 = vmul.f32 %v420, 0.5
    %v422 = vtanh.pop %v421
    %v423 = vmul.f32 %v422, 0.5
    %v424 = vadd.f32 %v423, 0.5
    %v425 = vtanh.pop %v420
    %v427 = vrot.slane %v337, 4
    %v429 = vmul.f32 %v424, %v427
    %431 = vrot.lane.b32.xlu0 %v425, 64
    %v432 = vpop.permute.xlu0 %431
    %v434 = vmul.f32 %v424, %v432
    %436 = vrot.lane.b32.xlu0 %v434, 32
    %v437 = vpop.permute.xlu0 %436
    %v439 = vadd.f32 %v429, %v437
    %v440 = vtanh.pop %v439
    %442 = vrot.lane.b32.xlu0 %v440, 64
    %v443 = vpop.permute.xlu0 %442
    %v445 = vmul.f32 %v424, %v443
    %447 = vrot.lane.b32.xlu0 %v445, 32
    %v448 = vpop.permute.xlu0 %447
    %v449 = vsel %vm143, %v448, 0
    %451 = vmatprep.subr.mxu0 0.0
    %452 = vmatpush1.msra.mxu0 %v139
    %453 = vmatprep.subr.mxu0 0.0
    %454 = vmatpush1.msra.mxu0 %v140
    %455 = vmatprep.subr.mxu0 0.0
    %456 = vmatpush1.msra.mxu0 %v141
    %457 = vmatprep.subr.mxu0 0.0
    %458 = vmatpush1.msra.mxu0 %v142
    %459 = vmatprep.subr.mxu0 0.0
    %460 = vmatpush1.msra.mxu0 0.0
    %461 = vmatprep.subr.mxu0 0.0
    %462 = vmatpush1.msra.mxu0 0.0
    %463 = vmatprep.subr.mxu0 0.0
    %464 = vmatpush1.msra.mxu0 0.0
    %465 = vmatprep.subr.mxu0 0.0
    %466 = vmatpush1.msra.mxu0 0.0
    %467 = vmatprep.subr.mxu0 0.0
    %468 = vmatpush1.msra.mxu0 0.0
    %469 = vmatprep.subr.mxu0 0.0
    %470 = vmatpush1.msra.mxu0 0.0
    %471 = vmatprep.subr.mxu0 0.0
    %472 = vmatpush1.msra.mxu0 0.0
    %473 = vmatprep.subr.mxu0 0.0
    %474 = vmatpush1.msra.mxu0 0.0
    %475 = vmatprep.subr.mxu0 0.0
    %476 = vmatpush1.msra.mxu0 0.0
    %477 = vmatprep.subr.mxu0 0.0
    %478 = vmatpush1.msra.mxu0 0.0
    %479 = vmatprep.subr.mxu0 0.0
    %480 = vmatpush1.msra.mxu0 0.0
    %481 = vmatprep.subr.mxu0 0.0
    %482 = vmatpush1.msra.mxu0 0.0
    %483 = vmatprep.subr.mxu0 0.0
    %484 = vmatpush1.msra.mxu0 0.0
    %485 = vmatprep.subr.mxu0 0.0
    %486 = vmatpush1.msra.mxu0 0.0
    %487 = vmatprep.subr.mxu0 0.0
    %488 = vmatpush1.msra.mxu0 0.0
    %489 = vmatprep.subr.mxu0 0.0
    %490 = vmatpush1.msra.mxu0 0.0
    %491 = vmatprep.subr.mxu0 0.0
    %492 = vmatpush1.msra.mxu0 0.0
    %493 = vmatprep.subr.mxu0 0.0
    %494 = vmatpush1.msra.mxu0 0.0
    %495 = vmatprep.subr.mxu0 0.0
    %496 = vmatpush1.msra.mxu0 0.0
    %497 = vmatprep.subr.mxu0 0.0
    %498 = vmatpush1.msra.mxu0 0.0
    %499 = vmatprep.subr.mxu0 0.0
    %500 = vmatpush1.msra.mxu0 0.0
    %501 = vmatprep.subr.mxu0 0.0
    %502 = vmatpush1.msra.mxu0 0.0
    %503 = vmatprep.subr.mxu0 0.0
    %504 = vmatpush1.msra.mxu0 0.0
    %505 = vmatprep.subr.mxu0 0.0
    %506 = vmatpush1.msra.mxu0 0.0
    %507 = vmatprep.subr.mxu0 0.0
    %508 = vmatpush1.msra.mxu0 0.0
    %509 = vmatprep.subr.mxu0 0.0
    %510 = vmatpush1.msra.mxu0 0.0
    %511 = vmatprep.subr.mxu0 0.0
    %512 = vmatpush1.msra.mxu0 0.0
    %513 = vmatprep.subr.mxu0 0.0
    %514 = vmatpush1.msra.mxu0 0.0
    %515 = vmatprep.mubr.f32.mxu0 0.0
    %516 = vmatmul.mubr.f32.gmra.mrb[0].mxu0 %v449
    %v517 = vpop.f32.mrb[0].mxu0
    %v518 = vadd.f32 0.0, %v517
    %v519 = vpop.f32.mrb[0].mxu0
    %520 = vdwg.mxu0
    %v522 = vrot.slane %v518, 4
    %v524 = vadd.f32 %v126, %v522
    %v525 = vmul.f32 %v524, 0.5
    %v526 = vtanh.pop %v525
    %v527 = vmul.f32 %v526, 0.5
    %v528 = vadd.f32 %v527, 0.5
    %v529 = vtanh.pop %v524
    %v531 = vrot.slane %v439, 4
    %v533 = vmul.f32 %v528, %v531
    %535 = vrot.lane.b32.xlu0 %v529, 64
    %v536 = vpop.permute.xlu0 %535
    %v538 = vmul.f32 %v528, %v536
    %540 = vrot.lane.b32.xlu0 %v538, 32
    %v541 = vpop.permute.xlu0 %540
    %v543 = vadd.f32 %v533, %v541
    %v544 = vtanh.pop %v543
    %546 = vrot.lane.b32.xlu0 %v544, 64
    %v547 = vpop.permute.xlu0 %546
    %v549 = vmul.f32 %v528, %v547
    %v551 = vrot.slane %v549, 4
    %552 = vrot.lane.b32.xlu0 %v551, 32
    %v553 = vpop.permute.xlu0 %552
    %v554 = vsel %vm143, %v553, 0
    %556 = vmatprep.subr.mxu0 0.0
    %557 = vmatpush1.msra.mxu0 %v139
    %558 = vmatprep.subr.mxu0 0.0
    %559 = vmatpush1.msra.mxu0 %v140
    %560 = vmatprep.subr.mxu0 0.0
    %561 = vmatpush1.msra.mxu0 %v141
    %562 = vmatprep.subr.mxu0 0.0
    %563 = vmatpush1.msra.mxu0 %v142
    %564 = vmatprep.subr.mxu0 0.0
    %565 = vmatpush1.msra.mxu0 0.0
    %566 = vmatprep.subr.mxu0 0.0
    %567 = vmatpush1.msra.mxu0 0.0
    %568 = vmatprep.subr.mxu0 0.0
    %569 = vmatpush1.msra.mxu0 0.0
    %570 = vmatprep.subr.mxu0 0.0
    %571 = vmatpush1.msra.mxu0 0.0
    %572 = vmatprep.subr.mxu0 0.0
    %573 = vmatpush1.msra.mxu0 0.0
    %574 = vmatprep.subr.mxu0 0.0
    %575 = vmatpush1.msra.mxu0 0.0
    %576 = vmatprep.subr.mxu0 0.0
    %577 = vmatpush1.msra.mxu0 0.0
    %578 = vmatprep.subr.mxu0 0.0
    %579 = vmatpush1.msra.mxu0 0.0
    %580 = vmatprep.subr.mxu0 0.0
    %581 = vmatpush1.msra.mxu0 0.0
    %582 = vmatprep.subr.mxu0 0.0
    %583 = vmatpush1.msra.mxu0 0.0
    %584 = vmatprep.subr.mxu0 0.0
    %585 = vmatpush1.msra.mxu0 0.0
    %586 = vmatprep.subr.mxu0 0.0
    %587 = vmatpush1.msra.mxu0 0.0
    %588 = vmatprep.subr.mxu0 0.0
    %589 = vmatpush1.msra.mxu0 0.0
    %590 = vmatprep.subr.mxu0 0.0
    %591 = vmatpush1.msra.mxu0 0.0
    %592 = vmatprep.subr.mxu0 0.0
    %593 = vmatpush1.msra.mxu0 0.0
    %594 = vmatprep.subr.mxu0 0.0
    %595 = vmatpush1.msra.mxu0 0.0
    %596 = vmatprep.subr.mxu0 0.0
    %597 = vmatpush1.msra.mxu0 0.0
    %598 = vmatprep.subr.mxu0 0.0
    %599 = vmatpush1.msra.mxu0 0.0
    %600 = vmatprep.subr.mxu0 0.0
    %601 = vmatpush1.msra.mxu0 0.0
    %602 = vmatprep.subr.mxu0 0.0
    %603 = vmatpush1.msra.mxu0 0.0
    %604 = vmatprep.subr.mxu0 0.0
    %605 = vmatpush1.msra.mxu0 0.0
    %606 = vmatprep.subr.mxu0 0.0
    %607 = vmatpush1.msra.mxu0 0.0
    %608 = vmatprep.subr.mxu0 0.0
    %609 = vmatpush1.msra.mxu0 0.0
    %610 = vmatprep.subr.mxu0 0.0
    %611 = vmatpush1.msra.mxu0 0.0
    %612 = vmatprep.subr.mxu0 0.0
    %613 = vmatpush1.msra.mxu0 0.0
    %614 = vmatprep.subr.mxu0 0.0
    %615 = vmatpush1.msra.mxu0 0.0
    %616 = vmatprep.subr.mxu0 0.0
    %617 = vmatpush1.msra.mxu0 0.0
    %618 = vmatprep.subr.mxu0 0.0
    %619 = vmatpush1.msra.mxu0 0.0
    %620 = vmatprep.mubr.f32.mxu0 0.0
    %621 = vmatmul.mubr.f32.gmra.mrb[0].mxu0 %v554
    %v622 = vpop.f32.mrb[0].mxu0
    %v623 = vadd.f32 0.0, %v622
    %v624 = vpop.f32.mrb[0].mxu0
    %625 = vdwg.mxu0
    %v626 = vadd.f32 %v131, %v623
    %v627 = vmul.f32 %v626, 0.5
    %v628 = vtanh.pop %v627
    %v629 = vmul.f32 %v628, 0.5
    %v630 = vadd.f32 %v629, 0.5
    %v631 = vtanh.pop %v626
    %v633 = vrot.slane %v543, 4
    %v635 = vmul.f32 %v630, %v633
    %637 = vrot.lane.b32.xlu0 %v631, 64
    %v638 = vpop.permute.xlu0 %637
    %v640 = vmul.f32 %v630, %v638
    %642 = vrot.lane.b32.xlu0 %v640, 32
    %v643 = vpop.permute.xlu0 %642
    %v645 = vadd.f32 %v635, %v643
    %v646 = vtanh.pop %v645
    %648 = vrot.lane.b32.xlu0 %v646, 64
    %v649 = vpop.permute.xlu0 %648
    %v651 = vmul.f32 %v630, %v649
    %653 = vrot.lane.b32.xlu0 %v651, 32
    %v654 = vpop.permute.xlu0 %653
    %v655 = vsel %vm143, %v654, 0
    %657 = vmatprep.subr.mxu0 0.0
    %658 = vmatpush1.msra.mxu0 %v139
    %659 = vmatprep.subr.mxu0 0.0
    %660 = vmatpush1.msra.mxu0 %v140
    %661 = vmatprep.subr.mxu0 0.0
    %662 = vmatpush1.msra.mxu0 %v141
    %663 = vmatprep.subr.mxu0 0.0
    %664 = vmatpush1.msra.mxu0 %v142
    %665 = vmatprep.subr.mxu0 0.0
    %666 = vmatpush1.msra.mxu0 0.0
    %667 = vmatprep.subr.mxu0 0.0
    %668 = vmatpush1.msra.mxu0 0.0
    %669 = vmatprep.subr.mxu0 0.0
    %670 = vmatpush1.msra.mxu0 0.0
    %671 = vmatprep.subr.mxu0 0.0
    %672 = vmatpush1.msra.mxu0 0.0
    %673 = vmatprep.subr.mxu0 0.0
    %674 = vmatpush1.msra.mxu0 0.0
    %675 = vmatprep.subr.mxu0 0.0
    %676 = vmatpush1.msra.mxu0 0.0
    %677 = vmatprep.subr.mxu0 0.0
    %678 = vmatpush1.msra.mxu0 0.0
    %679 = vmatprep.subr.mxu0 0.0
    %680 = vmatpush1.msra.mxu0 0.0
    %681 = vmatprep.subr.mxu0 0.0
    %682 = vmatpush1.msra.mxu0 0.0
    %683 = vmatprep.subr.mxu0 0.0
    %684 = vmatpush1.msra.mxu0 0.0
    %685 = vmatprep.subr.mxu0 0.0
    %686 = vmatpush1.msra.mxu0 0.0
    %687 = vmatprep.subr.mxu0 0.0
    %688 = vmatpush1.msra.mxu0 0.0
    %689 = vmatprep.subr.mxu0 0.0
    %690 = vmatpush1.msra.mxu0 0.0
    %691 = vmatprep.subr.mxu0 0.0
    %692 = vmatpush1.msra.mxu0 0.0
    %693 = vmatprep.subr.mxu0 0.0
    %694 = vmatpush1.msra.mxu0 0.0
    %695 = vmatprep.subr.mxu0 0.0
    %696 = vmatpush1.msra.mxu0 0.0
    %697 = vmatprep.subr.mxu0 0.0
    %698 = vmatpush1.msra.mxu0 0.0
    %699 = vmatprep.subr.mxu0 0.0
    %700 = vmatpush1.msra.mxu0 0.0
    %701 = vmatprep.subr.mxu0 0.0
    %702 = vmatpush1.msra.mxu0 0.0
    %703 = vmatprep.subr.mxu0 0.0
    %704 = vmatpush1.msra.mxu0 0.0
    %705 = vmatprep.subr.mxu0 0.0
    %706 = vmatpush1.msra.mxu0 0.0
    %707 = vmatprep.subr.mxu0 0.0
    %708 = vmatpush1.msra.mxu0 0.0
    %709 = vmatprep.subr.mxu0 0.0
    %710 = vmatpush1.msra.mxu0 0.0
    %711 = vmatprep.subr.mxu0 0.0
    %712 = vmatpush1.msra.mxu0 0.0
    %713 = vmatprep.subr.mxu0 0.0
    %714 = vmatpush1.msra.mxu0 0.0
    %715 = vmatprep.subr.mxu0 0.0
    %716 = vmatpush1.msra.mxu0 0.0
    %717 = vmatprep.subr.mxu0 0.0
    %718 = vmatpush1.msra.mxu0 0.0
    %719 = vmatprep.subr.mxu0 0.0
    %720 = vmatpush1.msra.mxu0 0.0
    %721 = vmatprep.mubr.f32.mxu0 0.0
    %722 = vmatmul.mubr.f32.gmra.mrb[0].mxu0 %v655
    %v723 = vpop.f32.mrb[0].mxu0
    %v724 = vadd.f32 0.0, %v723
    %v725 = vpop.f32.mrb[0].mxu0
    %726 = vdwg.mxu0
    %v728 = vrot.slane %v724, 4
    %v730 = vadd.f32 %v131, %v728
    %v731 = vmul.f32 %v730, 0.5
    %v732 = vtanh.pop %v731
    %v733 = vmul.f32 %v732, 0.5
    %v734 = vadd.f32 %v733, 0.5
    %v735 = vtanh.pop %v730
    %v737 = vrot.slane %v645, 4
    %v739 = vmul.f32 %v734, %v737
    %741 = vrot.lane.b32.xlu0 %v735, 64
    %v742 = vpop.permute.xlu0 %741
    %v744 = vmul.f32 %v734, %v742
    %746 = vrot.lane.b32.xlu0 %v744, 32
    %v747 = vpop.permute.xlu0 %746
    %v749 = vadd.f32 %v739, %v747
    %v750 = vtanh.pop %v749
    %752 = vrot.lane.b32.xlu0 %v750, 64
    %v753 = vpop.permute.xlu0 %752
    %v755 = vmul.f32 %v734, %v753
    %v757 = vrot.slane %v755, 4
    %758 = vrot.lane.b32.xlu0 %v757, 32
    %v759 = vpop.permute.xlu0 %758
    %v760 = vsel %vm143, %v759, 0
    %762 = vmatprep.subr.mxu0 0.0
    %763 = vmatpush1.msra.mxu0 %v139
    %764 = vmatprep.subr.mxu0 0.0
    %765 = vmatpush1.msra.mxu0 %v140
    %766 = vmatprep.subr.mxu0 0.0
    %767 = vmatpush1.msra.mxu0 %v141
    %768 = vmatprep.subr.mxu0 0.0
    %769 = vmatpush1.msra.mxu0 %v142
    %770 = vmatprep.subr.mxu0 0.0
    %771 = vmatpush1.msra.mxu0 0.0
    %772 = vmatprep.subr.mxu0 0.0
    %773 = vmatpush1.msra.mxu0 0.0
    %774 = vmatprep.subr.mxu0 0.0
    %775 = vmatpush1.msra.mxu0 0.0
    %776 = vmatprep.subr.mxu0 0.0
    %777 = vmatpush1.msra.mxu0 0.0
    %778 = vmatprep.subr.mxu0 0.0
    %779 = vmatpush1.msra.mxu0 0.0
    %780 = vmatprep.subr.mxu0 0.0
    %781 = vmatpush1.msra.mxu0 0.0
    %782 = vmatprep.subr.mxu0 0.0
    %783 = vmatpush1.msra.mxu0 0.0
    %784 = vmatprep.subr.mxu0 0.0
    %785 = vmatpush1.msra.mxu0 0.0
    %786 = vmatprep.subr.mxu0 0.0
    %787 = vmatpush1.msra.mxu0 0.0
    %788 = vmatprep.subr.mxu0 0.0
    %789 = vmatpush1.msra.mxu0 0.0
    %790 = vmatprep.subr.mxu0 0.0
    %791 = vmatpush1.msra.mxu0 0.0
    %792 = vmatprep.subr.mxu0 0.0
    %793 = vmatpush1.msra.mxu0 0.0
    %794 = vmatprep.subr.mxu0 0.0
    %795 = vmatpush1.msra.mxu0 0.0
    %796 = vmatprep.subr.mxu0 0.0
    %797 = vmatpush1.msra.mxu0 0.0
    %798 = vmatprep.subr.mxu0 0.0
    %799 = vmatpush1.msra.mxu0 0.0
    %800 = vmatprep.subr.mxu0 0.0
    %801 = vmatpush1.msra.mxu0 0.0
    %802 = vmatprep.subr.mxu0 0.0
    %803 = vmatpush1.msra.mxu0 0.0
    %804 = vmatprep.subr.mxu0 0.0
    %805 = vmatpush1.msra.mxu0 0.0
    %806 = vmatprep.subr.mxu0 0.0
    %807 = vmatpush1.msra.mxu0 0.0
    %808 = vmatprep.subr.mxu0 0.0
    %809 = vmatpush1.msra.mxu0 0.0
    %810 = vmatprep.subr.mxu0 0.0
    %811 = vmatpush1.msra.mxu0 0.0
    %812 = vmatprep.subr.mxu0 0.0
    %813 = vmatpush1.msra.mxu0 0.0
    %814 = vmatprep.subr.mxu0 0.0
    %815 = vmatpush1.msra.mxu0 0.0
    %816 = vmatprep.subr.mxu0 0.0
    %817 = vmatpush1.msra.mxu0 0.0
    %818 = vmatprep.subr.mxu0 0.0
    %819 = vmatpush1.msra.mxu0 0.0
    %820 = vmatprep.subr.mxu0 0.0
    %821 = vmatpush1.msra.mxu0 0.0
    %822 = vmatprep.subr.mxu0 0.0
    %823 = vmatpush1.msra.mxu0 0.0
    %824 = vmatprep.subr.mxu0 0.0
    %825 = vmatpush1.msra.mxu0 0.0
    %826 = vmatprep.mubr.f32.mxu0 0.0
    %827 = vmatmul.mubr.f32.gmra.mrb[0].mxu0 %v760
    %v828 = vpop.f32.mrb[0].mxu0
    %v829 = vadd.f32 0.0, %v828
    %v830 = vpop.f32.mrb[0].mxu0
    %831 = vdwg.mxu0
    %v832 = vadd.f32 %v136, %v829
    %v833 = vmul.f32 %v832, 0.5
    %v834 = vtanh.pop %v833
    %v835 = vmul.f32 %v834, 0.5
    %v836 = vadd.f32 %v835, 0.5
    %v837 = vtanh.pop %v832
    %v839 = vrot.slane %v749, 4
    %v841 = vmul.f32 %v836, %v839
    %843 = vrot.lane.b32.xlu0 %v837, 64
    %v844 = vpop.permute.xlu0 %843
    %v846 = vmul.f32 %v836, %v844
    %848 = vrot.lane.b32.xlu0 %v846, 32
    %v849 = vpop.permute.xlu0 %848
    %v851 = vadd.f32 %v841, %v849
    %v852 = vtanh.pop %v851
    %854 = vrot.lane.b32.xlu0 %v852, 64
    %v855 = vpop.permute.xlu0 %854
    %v857 = vmul.f32 %v836, %v855
    %859 = vrot.lane.b32.xlu0 %v857, 32
    %v860 = vpop.permute.xlu0 %859
    %v861 = vsel %vm143, %v860, 0
    %863 = vmatprep.subr.mxu0 0.0
    %864 = vmatpush1.msra.mxu0 %v139
    %865 = vmatprep.subr.mxu0 0.0
    %866 = vmatpush1.msra.mxu0 %v140
    %867 = vmatprep.subr.mxu0 0.0
    %868 = vmatpush1.msra.mxu0 %v141
    %869 = vmatprep.subr.mxu0 0.0
    %870 = vmatpush1.msra.mxu0 %v142
    %871 = vmatprep.subr.mxu0 0.0
    %872 = vmatpush1.msra.mxu0 0.0
    %873 = vmatprep.subr.mxu0 0.0
    %874 = vmatpush1.msra.mxu0 0.0
    %875 = vmatprep.subr.mxu0 0.0
    %876 = vmatpush1.msra.mxu0 0.0
    %877 = vmatprep.subr.mxu0 0.0
    %878 = vmatpush1.msra.mxu0 0.0
    %879 = vmatprep.subr.mxu0 0.0
    %880 = vmatpush1.msra.mxu0 0.0
    %881 = vmatprep.subr.mxu0 0.0
    %882 = vmatpush1.msra.mxu0 0.0
    %883 = vmatprep.subr.mxu0 0.0
    %884 = vmatpush1.msra.mxu0 0.0
    %885 = vmatprep.subr.mxu0 0.0
    %886 = vmatpush1.msra.mxu0 0.0
    %887 = vmatprep.subr.mxu0 0.0
    %888 = vmatpush1.msra.mxu0 0.0
    %889 = vmatprep.subr.mxu0 0.0
    %890 = vmatpush1.msra.mxu0 0.0
    %891 = vmatprep.subr.mxu0 0.0
    %892 = vmatpush1.msra.mxu0 0.0
    %893 = vmatprep.subr.mxu0 0.0
    %894 = vmatpush1.msra.mxu0 0.0
    %895 = vmatprep.subr.mxu0 0.0
    %896 = vmatpush1.msra.mxu0 0.0
    %897 = vmatprep.subr.mxu0 0.0
    %898 = vmatpush1.msra.mxu0 0.0
    %899 = vmatprep.subr.mxu0 0.0
    %900 = vmatpush1.msra.mxu0 0.0
    %901 = vmatprep.subr.mxu0 0.0
    %902 = vmatpush1.msra.mxu0 0.0
    %903 = vmatprep.subr.mxu0 0.0
    %904 = vmatpush1.msra.mxu0 0.0
    %905 = vmatprep.subr.mxu0 0.0
    %906 = vmatpush1.msra.mxu0 0.0
    %907 = vmatprep.subr.mxu0 0.0
    %908 = vmatpush1.msra.mxu0 0.0
    %909 = vmatprep.subr.mxu0 0.0
    %910 = vmatpush1.msra.mxu0 0.0
    %911 = vmatprep.subr.mxu0 0.0
    %912 = vmatpush1.msra.mxu0 0.0
    %913 = vmatprep.subr.mxu0 0.0
    %914 = vmatpush1.msra.mxu0 0.0
    %915 = vmatprep.subr.mxu0 0.0
    %916 = vmatpush1.msra.mxu0 0.0
    %917 = vmatprep.subr.mxu0 0.0
    %918 = vmatpush1.msra.mxu0 0.0
    %919 = vmatprep.subr.mxu0 0.0
    %920 = vmatpush1.msra.mxu0 0.0
    %921 = vmatprep.subr.mxu0 0.0
    %922 = vmatpush1.msra.mxu0 0.0
    %923 = vmatprep.subr.mxu0 0.0
    %924 = vmatpush1.msra.mxu0 0.0
    %925 = vmatprep.subr.mxu0 0.0
    %926 = vmatpush1.msra.mxu0 0.0
    %927 = vmatprep.mubr.f32.mxu0 0.0
    %928 = vmatmul.mubr.f32.gmra.mrb[0].mxu0 %v861
    %v929 = vpop.f32.mrb[0].mxu0
    %v930 = vadd.f32 0.0, %v929
    %v931 = vpop.f32.mrb[0].mxu0
    %932 = vdwg.mxu0
    %v934 = vrot.slane %v930, 4
    %v936 = vadd.f32 %v136, %v934
    %v937 = vmul.f32 %v936, 0.5
    %v938 = vtanh.pop %v937
    %v939 = vmul.f32 %v938, 0.5
    %v940 = vadd.f32 %v939, 0.5
    %v941 = vtanh.pop %v936
    %v943 = vrot.slane %v851, 4
    %v945 = vmul.f32 %v940, %v943
    %947 = vrot.lane.b32.xlu0 %v941, 64
    %v948 = vpop.permute.xlu0 %947
    %v950 = vmul.f32 %v940, %v948
    %952 = vrot.lane.b32.xlu0 %v950, 32
    %v953 = vpop.permute.xlu0 %952
    %v955 = vadd.f32 %v945, %v953
    %v956 = vtanh.pop %v955
    %958 = vrot.lane.b32.xlu0 %v956, 64
    %v959 = vpop.permute.xlu0 %958
    %v961 = vmul.f32 %v940, %v959
    %v962 = vld [vmem:[%s4] sm:$0xff]
    %v963 = vld [vmem:[%s4 + $0x8] sm:$0xff]
    %v964 = vld [vmem:[%s4 + $0x10] sm:$0xff]
    %v965 = vld [vmem:[%s4 + $0x18] sm:$0xff]
    %v966 = vld [vmem:[%s5] sm:$0x1]
    %v968 = vlaneseq
    %v969 = vshrl.u32 %v968, 7
    %v970 = vsub.s32 0, %v969
    %v971 = vrot.slane %v966, %v970
    %v974 = vrot.slane %v961, 4
    %975 = vrot.lane.b32.xlu0 %v974, 32
    %v976 = vpop.permute.xlu0 %975
    %v977 = vsel %vm143, %v976, 0
    %979 = vmatprep.subr.mxu0 0.0
    %980 = vmatpush1.msra.mxu0 %v962
    %981 = vmatprep.subr.mxu0 0.0
    %982 = vmatpush1.msra.mxu0 %v963
    %983 = vmatprep.subr.mxu0 0.0
    %984 = vmatpush1.msra.mxu0 %v964
    %985 = vmatprep.subr.mxu0 0.0
    %986 = vmatpush1.msra.mxu0 %v965
    %987 = vmatprep.subr.mxu0 0.0
    %988 = vmatpush1.msra.mxu0 0.0
    %989 = vmatprep.subr.mxu0 0.0
    %990 = vmatpush1.msra.mxu0 0.0
    %991 = vmatprep.subr.mxu0 0.0
    %992 = vmatpush1.msra.mxu0 0.0
    %993 = vmatprep.subr.mxu0 0.0
    %994 = vmatpush1.msra.mxu0 0.0
    %995 = vmatprep.subr.mxu0 0.0
    %996 = vmatpush1.msra.mxu0 0.0
    %997 = vmatprep.subr.mxu0 0.0
    %998 = vmatpush1.msra.mxu0 0.0
    %999 = vmatprep.subr.mxu0 0.0
    %1000 = vmatpush1.msra.mxu0 0.0
    %1001 = vmatprep.subr.mxu0 0.0
    %1002 = vmatpush1.msra.mxu0 0.0
    %1003 = vmatprep.subr.mxu0 0.0
    %1004 = vmatpush1.msra.mxu0 0.0
    %1005 = vmatprep.subr.mxu0 0.0
    %1006 = vmatpush1.msra.mxu0 0.0
    %1007 = vmatprep.subr.mxu0 0.0
    %1008 = vmatpush1.msra.mxu0 0.0
    %1009 = vmatprep.subr.mxu0 0.0
    %1010 = vmatpush1.msra.mxu0 0.0
    %1011 = vmatprep.subr.mxu0 0.0
    %1012 = vmatpush1.msra.mxu0 0.0
    %1013 = vmatprep.subr.mxu0 0.0
    %1014 = vmatpush1.msra.mxu0 0.0
    %1015 = vmatprep.subr.mxu0 0.0
    %1016 = vmatpush1.msra.mxu0 0.0
    %1017 = vmatprep.subr.mxu0 0.0
    %1018 = vmatpush1.msra.mxu0 0.0
    %1019 = vmatprep.subr.mxu0 0.0
    %1020 = vmatpush1.msra.mxu0 0.0
    %1021 = vmatprep.subr.mxu0 0.0
    %1022 = vmatpush1.msra.mxu0 0.0
    %1023 = vmatprep.subr.mxu0 0.0
    %1024 = vmatpush1.msra.mxu0 0.0
    %1025 = vmatprep.subr.mxu0 0.0
    %1026 = vmatpush1.msra.mxu0 0.0
    %1027 = vmatprep.subr.mxu0 0.0
    %1028 = vmatpush1.msra.mxu0 0.0
    %1029 = vmatprep.subr.mxu0 0.0
    %1030 = vmatpush1.msra.mxu0 0.0
    %1031 = vmatprep.subr.mxu0 0.0
    %1032 = vmatpush1.msra.mxu0 0.0
    %1033 = vmatprep.subr.mxu0 0.0
    %1034 = vmatpush1.msra.mxu0 0.0
    %1035 = vmatprep.subr.mxu0 0.0
    %1036 = vmatpush1.msra.mxu0 0.0
    %1037 = vmatprep.subr.mxu0 0.0
    %1038 = vmatpush1.msra.mxu0 0.0
    %1039 = vmatprep.subr.mxu0 0.0
    %1040 = vmatpush1.msra.mxu0 0.0
    %1041 = vmatprep.subr.mxu0 0.0
    %1042 = vmatpush1.msra.mxu0 0.0
    %1043 = vmatprep.mubr.f32.mxu0 0.0
    %1044 = vmatmul.mubr.f32.gmra.mrb[0].mxu0 %v977
    %v1045 = vpop.f32.mrb[0].mxu0
    %v1046 = vadd.f32 %v971, %v1045
    %v1047 = vpop.f32.mrb[0].mxu0
    %1048 = vdwg.mxu0
    %s1049 = scalar_lea.vmem %s4, 32
    %v1050 = vld [vmem:[%s1049] sm:$0xff]
    %v1051 = vld [vmem:[%s1049 + $0x8] sm:$0xff]
    %v1052 = vld [vmem:[%s1049 + $0x10] sm:$0xff]
    %v1053 = vld [vmem:[%s1049 + $0x18] sm:$0xff]
    %s1054 = scalar_lea.vmem %s5, 1
    %v1055 = vld [vmem:[%s1054] sm:$0x1]
    %v1057 = vlaneseq
    %v1058 = vshrl.u32 %v1057, 7
    %v1059 = vsub.s32 0, %v1058
    %v1060 = vrot.slane %v1055, %v1059
    %v1062 = vrot.slane %v961, 6
    %1063 = vrot.lane.b32.xlu0 %v1062, 32
    %v1064 = vpop.permute.xlu0 %1063
    %v1065 = vsel %vm143, %v1064, 0
    %1067 = vmatprep.subr.mxu0 0.0
    %1068 = vmatpush1.msra.mxu0 %v1050
    %1069 = vmatprep.subr.mxu0 0.0
    %1070 = vmatpush1.msra.mxu0 %v1051
    %1071 = vmatprep.subr.mxu0 0.0
    %1072 = vmatpush1.msra.mxu0 %v1052
    %1073 = vmatprep.subr.mxu0 0.0
    %1074 = vmatpush1.msra.mxu0 %v1053
    %1075 = vmatprep.subr.mxu0 0.0
    %1076 = vmatpush1.msra.mxu0 0.0
    %1077 = vmatprep.subr.mxu0 0.0
    %1078 = vmatpush1.msra.mxu0 0.0
    %1079 = vmatprep.subr.mxu0 0.0
    %1080 = vmatpush1.msra.mxu0 0.0
    %1081 = vmatprep.subr.mxu0 0.0
    %1082 = vmatpush1.msra.mxu0 0.0
    %1083 = vmatprep.subr.mxu0 0.0
    %1084 = vmatpush1.msra.mxu0 0.0
    %1085 = vmatprep.subr.mxu0 0.0
    %1086 = vmatpush1.msra.mxu0 0.0
    %1087 = vmatprep.subr.mxu0 0.0
    %1088 = vmatpush1.msra.mxu0 0.0
    %1089 = vmatprep.subr.mxu0 0.0
    %1090 = vmatpush1.msra.mxu0 0.0
    %1091 = vmatprep.subr.mxu0 0.0
    %1092 = vmatpush1.msra.mxu0 0.0
    %1093 = vmatprep.subr.mxu0 0.0
    %1094 = vmatpush1.msra.mxu0 0.0
    %1095 = vmatprep.subr.mxu0 0.0
    %1096 = vmatpush1.msra.mxu0 0.0
    %1097 = vmatprep.subr.mxu0 0.0
    %1098 = vmatpush1.msra.mxu0 0.0
    %1099 = vmatprep.subr.mxu0 0.0
    %1100 = vmatpush1.msra.mxu0 0.0
    %1101 = vmatprep.subr.mxu0 0.0
    %1102 = vmatpush1.msra.mxu0 0.0
    %1103 = vmatprep.subr.mxu0 0.0
    %1104 = vmatpush1.msra.mxu0 0.0
    %1105 = vmatprep.subr.mxu0 0.0
    %1106 = vmatpush1.msra.mxu0 0.0
    %1107 = vmatprep.subr.mxu0 0.0
    %1108 = vmatpush1.msra.mxu0 0.0
    %1109 = vmatprep.subr.mxu0 0.0
    %1110 = vmatpush1.msra.mxu0 0.0
    %1111 = vmatprep.subr.mxu0 0.0
    %1112 = vmatpush1.msra.mxu0 0.0
    %1113 = vmatprep.subr.mxu0 0.0
    %1114 = vmatpush1.msra.mxu0 0.0
    %1115 = vmatprep.subr.mxu0 0.0
    %1116 = vmatpush1.msra.mxu0 0.0
    %1117 = vmatprep.subr.mxu0 0.0
    %1118 = vmatpush1.msra.mxu0 0.0
    %1119 = vmatprep.subr.mxu0 0.0
    %1120 = vmatpush1.msra.mxu0 0.0
    %1121 = vmatprep.subr.mxu0 0.0
    %1122 = vmatpush1.msra.mxu0 0.0
    %1123 = vmatprep.subr.mxu0 0.0
    %1124 = vmatpush1.msra.mxu0 0.0
    %1125 = vmatprep.subr.mxu0 0.0
    %1126 = vmatpush1.msra.mxu0 0.0
    %1127 = vmatprep.subr.mxu0 0.0
    %1128 = vmatpush1.msra.mxu0 0.0
    %1129 = vmatprep.subr.mxu0 0.0
    %1130 = vmatpush1.msra.mxu0 0.0
    %1131 = vmatprep.mubr.f32.mxu0 0.0
    %1132 = vmatmul.mubr.f32.gmra.mrb[0].mxu0 %v1065
    %v1133 = vpop.f32.mrb[0].mxu0
    %v1134 = vadd.f32 %v1060, %v1133
    %v1135 = vpop.f32.mrb[0].mxu0
    %1136 = vdwg.mxu0
    %v1138 = vrot.slane %v1134, 6
    %vm1140 = vcmask 1041408
    %v1141 = vsel %vm1140, %v1046, %v1138
    %vm1142 = vcmask 60416
    %1143 = vst.msk [vmem:[#allocation2] sm:$0xf] %vm1142, %v1141
    // Predicated region
    $region26: #{tpu_custom_call.1} parent=1 // pred_check
      _
    $region27: #{tpu_custom_call.1} parent=1 // pred_check_branch
      %1145 = sbr.rel (0) target = $region29
    $region28: #{tpu_custom_call.1} parent=1 // pred_region
      %s1147 = ssub.s32 64, 64
      %1148 = vsyncadd [#allocation3], %s1147
      %s1150 = sshll.u32 [#allocation2], 4
      %s1151 = int_to_ptr.vmem [resolvable:$true] %s1150
      %1153 = dma.vmem_to_hbm [thread:$0]  %s1151, 64, %s6, [#allocation3]
    $region29: #{tpu_custom_call.1} parent=1 // pred_fallthru
      _
    // Predicated region
    $region30: #{tpu_custom_call.1} parent=1 // pred_check
      _
    $region31: #{tpu_custom_call.1} parent=1 // pred_check_branch
      %1155 = sbr.rel (0) target = $region33
    $region32: #{tpu_custom_call.1} parent=1 // pred_region
      %1156 = dma.done [#allocation3], 64
    $region33: #{tpu_custom_call.1} parent=1 // pred_fallthru
      _
    %1157 = vsyncpa [#allocation3], 1

</llo_original>
